<compile_context>
chip_gen: v5e
topology: v5e:2x2
jax: 0.10.0
libtpu: 0.0.40
codegen_flags: <defaults>
</compile_context>

<pallas_src>
import math

import jax
import jax.numpy as jnp
from jax.experimental import pallas as pl
from jax.experimental.pallas import tpu as pltpu

_LANE = 128
_C0 = math.sqrt(2.0 / math.pi)
# NOTE: 0.0044715 is faithfully copied from the source PyTorch module (the
# canonical GELU constant would be 0.044715).
_C1 = _C0 * 0.0044715


def _gelu_kernel(x_ref, o_ref):
    # Compute in f32 regardless of storage dtype: required on v5e (no bf16
    # VPU/EUP) and accuracy-safe everywhere; extra VALU work hides under DMA.
    x = x_ref[...].astype(jnp.float32)
    inner = x * (jnp.float32(_C0) + jnp.float32(_C1) * (x * x))
    y = jnp.float32(0.5) * x * (jnp.float32(1.0) + jnp.tanh(inner))
    o_ref[...] = y.astype(o_ref.dtype)


def _block_bytes_and_vmem_limit():
    """Per-generation tile size + scoped-VMEM limit (None = compiler default)."""
    kind = ""
    try:
        kind = jax.devices()[0].device_kind.lower()
    except Exception:
        pass
    if "v5 lite" in kind or "v5e" in kind or "v5lite" in kind:
        # Default scoped VMEM is 16 MiB: 4 buffers x 2 MiB leaves headroom, and
        # at 0.82 TB/s the per-step overhead is already <10% with 2 MiB tiles.
        return 2 << 20, None
    if "v7" in kind:
        # 3.2 TB/s makes the ~0.35us/step overhead significant -> bigger tiles,
        # but physical VMEM is 64 MiB/TC, so cap the scoped limit at 48 MiB.
        return 6 << 20, 48 << 20
    # v6e / unknown: 4 buffers x 4 MiB fits the default 32 MiB scoped VMEM.
    return 4 << 20, None


def _gelu_slab(flat, width, dtype):
    """Run the kernel over a 1-D array whose length is a multiple of `width`."""
    itemsize = jnp.dtype(dtype).itemsize
    sub = max(8, 32 // itemsize)  # sublane packing: 8 (f32), 16 (bf16/f16), 32 (i8)
    block_bytes, vmem_limit = _block_bytes_and_vmem_limit()

    n = flat.shape[0]
    rows = n // width
    slab = flat.reshape(rows, width)

    if rows <= sub:
        # Tiny tensor: one block equal to the full array dims (always legal).
        block_rows = rows
    else:
        target_rows = max(sub, (block_bytes // (width * itemsize)) // sub * sub)
        num_blocks = pl.cdiv(rows, target_rows)
        # >=2 and even block count -> balanced shards for v7x's two TensorCores.
        if num_blocks < 2:
            num_blocks = 2
        elif num_blocks % 2:
            num_blocks += 1
        block_rows = pl.cdiv(pl.cdiv(rows, num_blocks), sub) * sub
        block_rows = min(block_rows, rows)
    grid = (pl.cdiv(rows, block_rows),)

    out = pl.pallas_call(
        _gelu_kernel,
        out_shape=jax.ShapeDtypeStruct((rows, width), dtype),
        grid_spec=pl.GridSpec(
            grid=grid,
            in_specs=[pl.BlockSpec((block_rows, width), lambda i: (i, 0))],
            out_specs=pl.BlockSpec((block_rows, width), lambda i: (i, 0)),
        ),
        compiler_params=pltpu.CompilerParams(
            dimension_semantics=("parallel",),
            vmem_limit_bytes=vmem_limit,
        ),
        cost_estimate=pl.CostEstimate(
            flops=6 * n,
            transcendentals=n,
            bytes_accessed=2 * n * itemsize,
        ),
    )(slab)
    return out.reshape(-1)


def gelu_pallas(x: jax.Array) -> jax.Array:
    """GELU (tanh approx, coefficient 0.0044715) via a Pallas TPU kernel."""
    orig_shape = x.shape
    dtype = x.dtype
    n = x.size
    if n == 0:
        return x

    flat = x.reshape(-1)

    # Zero-copy fast path: widest fixed lane-dense width that divides n.
    for width in (512, 256, _LANE):
        if n % width == 0:
            return _gelu_slab(flat, width, dtype).reshape(orig_shape)

    # Ragged fallback (n not a multiple of 128): pad to a lane multiple.
    # TODO(synk): drive a masked tail store from a scalar-prefetched length to
    # avoid this full-tensor pad/slice copy on the rare ragged path.
    padded = pl.cdiv(n, _LANE) * _LANE
    flat = jnp.pad(flat, (0, padded - n))
    out = _gelu_slab(flat, _LANE, dtype)
    return out[:n].reshape(orig_shape)


def _gelu_ref(x):
    xf = x.astype(jnp.float32)
    c = jnp.sqrt(jnp.float32(2.0 / jnp.pi))
    y = 0.5 * xf * (1.0 + jnp.tanh(c * (xf + 0.0044715 * jnp.power(xf, 3))))
    return y.astype(x.dtype)


if __name__ == "__main__":
    key = jax.random.PRNGKey(0)
    # NCHW input, as the PyTorch module would receive: batch=2, ch=4, 16x16.
    x = jax.random.normal(key, (2, 4, 16, 16), dtype=jnp.float32)

    y = gelu_pallas(x)
    jax.block_until_ready(y)

    y_ref = _gelu_ref(x)
    assert y.shape == x.shape and y.dtype == x.dtype
    assert jnp.allclose(y, y_ref, atol=1e-5, rtol=1e-5)

    print("KERNEL_OK")
</pallas_src>

<mosaic_0001>
module attributes {stable_mosaic.version = 11 : i64} {
  func.func @_gelu_kernel(%arg0: i32, %arg1: memref<4x512xf32, #tpu.memory_space<vmem>>, %arg2: memref<4x512xf32, #tpu.memory_space<vmem>>) attributes {dimension_semantics = [#tpu.dimension_semantics<parallel>], iteration_bounds = array<i64: 1>, scalar_prefetch = 0 : i64, scratch_operands = 0 : i64, tpu.core_type = #tpu.core_type<tc>, window_params = [{transform_indices = @transform_0, window_bounds = array<i64: 4, 512>}, {transform_indices = @transform_1, window_bounds = array<i64: 4, 512>}]} {
    %c0 = arith.constant 0 : index
    %c0_0 = arith.constant 0 : index
    %0 = vector.load %arg1[%c0, %c0_0] : memref<4x512xf32, #tpu.memory_space<vmem>>, vector<4x512xf32>
    %1 = arith.mulf %0, %0 : vector<4x512xf32>
    %cst = arith.constant 0.00356774079 : f32
    %2 = vector.broadcast %cst : f32 to vector<4x512xf32>
    %3 = arith.mulf %2, %1 : vector<4x512xf32>
    %cst_1 = arith.constant 0.797884583 : f32
    %4 = vector.broadcast %cst_1 : f32 to vector<4x512xf32>
    %5 = arith.addf %4, %3 : vector<4x512xf32>
    %6 = arith.mulf %0, %5 : vector<4x512xf32>
    %cst_2 = arith.constant 5.000000e-01 : f32
    %7 = vector.broadcast %cst_2 : f32 to vector<4x512xf32>
    %8 = arith.mulf %7, %0 : vector<4x512xf32>
    %9 = math.tanh %6 : vector<4x512xf32>
    %cst_3 = arith.constant 1.000000e+00 : f32
    %10 = vector.broadcast %cst_3 : f32 to vector<4x512xf32>
    %11 = arith.addf %10, %9 : vector<4x512xf32>
    %12 = arith.mulf %8, %11 : vector<4x512xf32>
    %c0_4 = arith.constant 0 : index
    %c0_5 = arith.constant 0 : index
    %13 = vector.load %arg2[%c0_4, %c0_5] : memref<4x512xf32, #tpu.memory_space<vmem>>, vector<4x512xf32>
    tpu.vector_store %arg2[%c0_4, %c0_5], %12 {strides = array<i32>} : memref<4x512xf32, #tpu.memory_space<vmem>>, vector<4x512xf32>,
    return
  }
  func.func @transform_0(%arg0: i32) -> (i32, i32) {
    %c0_i32 = arith.constant 0 : i32
    %c0_i32_0 = arith.constant 0 : i32
    return %arg0, %c0_i32 : i32, i32
  }
  func.func @transform_1(%arg0: i32) -> (i32, i32) {
    %c0_i32 = arith.constant 0 : i32
    %c0_i32_0 = arith.constant 0 : i32
    return %arg0, %c0_i32 : i32, i32
  }
}

</mosaic_0001>

<llo_original>
// kernel: tpu_custom_call.1
$region0: #{tpu_custom_call.1}
  #allocation0 [shape = 'u32[]', space=smem, size = 0x4, offset = 0x4, fixed_abs, tag = 'smem constant byte address 0x4 - core index']
  #allocation1 [shape = 'u32[72,128]{1,0:T(1,128)}', space=vmem, size = 0x9000, scoped, tag = 'internal scratch']
  %s0 = inlined_call_operand.hbm [shape: f32[4,512], index: 0, kind: input, shape index: {}]
  %s1 = inlined_call_operand.hbm [shape: f32[4,512], index: 1, kind: output, shape index: {}]
  %s2 = sld [smem:[#allocation0]]
  $region18: #{tpu_custom_call.1} parent=0
    _
  %s4 = ssub.s32 1, %s2
  %s5 = scalar_select 0, %s4, %s2
  $region1: #{tpu_custom_call.1} parent=0
    #allocation2 [shape = 'u8[8192]{0}', space=vmem, size = 0x2000, scoped, tag = 'input window, operand 0, single buffered']
    #allocation3 [shape = 's32[1]{0}', space=sflag, size = 0x4, scoped, tag = 'scoped memory for tpu_custom_call.1']
    #allocation4 [shape = 's32[1]{0}', space=sflag, size = 0x4, scoped, tag = 'scoped memory for tpu_custom_call.1']
    #allocation5 [shape = 'u8[8192]{0}', space=vmem, size = 0x2000, scoped, tag = 'output window, operand 0, single buffered']
    %6 = vsyncpa [#allocation3], 0
    %7 = vsyncpa [#allocation4], 0
    // Predicated region
    $region2: #{tpu_custom_call.1} parent=1 // pred_check
      _
    $region3: #{tpu_custom_call.1} parent=1 // pred_check_branch
      %9 = sbr.rel (0) target = $region5
    $region4: #{tpu_custom_call.1} parent=1 // pred_region
      %11 = vsyncadd [#allocation3], 0
      %s13 = sshll.u32 %s0, 4
      %s14 = int_to_ptr.hbm [resolvable:$true] %s13
      %s15 = sshll.u32 [#allocation2], 4
      %s16 = int_to_ptr.vmem [resolvable:$true] %s15
      %18 = dma.hbm_to_vmem [thread:$0]  %s14, 256, %s16, [#allocation3]
    $region5: #{tpu_custom_call.1} parent=1 // pred_fallthru
      _
    // Predicated region
    $region6: #{tpu_custom_call.1} parent=1 // pred_check
      _
    $region7: #{tpu_custom_call.1} parent=1 // pred_check_branch
      %20 = sbr.rel (0) target = $region9
    $region8: #{tpu_custom_call.1} parent=1 // pred_region
      %22 = dma.done [#allocation3], 256
    $region9: #{tpu_custom_call.1} parent=1 // pred_fallthru
      _
    %v23 = vld [vmem:[#allocation2] sm:$0xff]
    %v24 = vld [vmem:[#allocation2 + $0x8] sm:$0xff]
    %v25 = vmul.f32 %v23, %v23
    %v26 = vmul.f32 %v24, %v24
    %v27 = vmul.f32 %v25, 0.0035677408
    %v28 = vmul.f32 %v26, 0.0035677408
    %v29 = vadd.f32 %v27, 0.7978846
    %v30 = vadd.f32 %v28, 0.7978846
    %v31 = vmul.f32 %v23, %v29
    %v32 = vmul.f32 %v24, %v30
    %v33 = vmul.f32 %v23, 0.5
    %v34 = vmul.f32 %v24, 0.5
    %v35 = vtanh.pop %v31
    %v36 = vtanh.pop %v32
    %v37 = vadd.f32 %v35, 1.0
    %v38 = vadd.f32 %v36, 1.0
    %v39 = vmul.f32 %v33, %v37
    %v40 = vmul.f32 %v34, %v38
    %41 = vst [vmem:[#allocation5] sm:$0xff] %v39
    %42 = vst [vmem:[#allocation5 + $0x8] sm:$0xff] %v40
    // Predicated region
    $region10: #{tpu_custom_call.1} parent=1 // pred_check
      _
    $region11: #{tpu_custom_call.1} parent=1 // pred_check_branch
      %44 = sbr.rel (0) target = $region13
    $region12: #{tpu_custom_call.1} parent=1 // pred_region
      %46 = vsyncadd [#allocation4], 0
      %s48 = sshll.u32 [#allocation5], 4
      %s49 = int_to_ptr.vmem [resolvable:$true] %s48
      %s50 = sshll.u32 %s1, 4
      %s51 = int_to_ptr.hbm [resolvable:$true] %s50
      %53 = dma.vmem_to_hbm [thread:$0]  %s49, 256, %s51, [#allocation4]
    $region13: #{tpu_custom_call.1} parent=1 // pred_fallthru
      _
    // Predicated region
    $region14: #{tpu_custom_call.1} parent=1 // pred_check
      _
    $region15: #{tpu_custom_call.1} parent=1 // pred_check_branch
      %55 = sbr.rel (0) target = $region17
    $region16: #{tpu_custom_call.1} parent=1 // pred_region
      %57 = dma.done [#allocation4], 256
    $region17: #{tpu_custom_call.1} parent=1 // pred_fallthru
      _
    %58 = vsyncpa [#allocation3], 1
    %59 = vsyncpa [#allocation4], 1

</llo_original>
